<compile_context>
chip_gen: v5e
topology: v5e:2x2
jax: 0.10.0
libtpu: 0.0.40
codegen_flags: <defaults>
</compile_context>

<pallas_src>
import functools

import jax
import jax.numpy as jnp
from jax import lax
from jax.experimental import pallas as pl
from jax.experimental.pallas import tpu as pltpu


def _round_up(x, m):
    return ((x + m - 1) // m) * m


def _padded_bytes(rows, cols, itemsize):
    """VMEM footprint of a (rows, cols) block after (8, 128) tile padding."""
    return _round_up(max(rows, 1), 8) * _round_up(max(cols, 1), 128) * itemsize


def transition_mlp_kernel(s_ref, a_ref,
                          w1s_ref, w1a_ref, b1_ref,
                          w2_ref, b2_ref,
                          w3_ref, b3_ref,
                          o_ref, *, precision=None):
    """Fused 3-layer MLP on one batch tile: (Linear+ReLU) x2 -> Linear.

    The [s, a] concat is folded into the first layer:
        h1 = s @ W1[:Ds] + a @ W1[Ds:] + b1
    All dots accumulate in f32 regardless of the streaming dtype.
    """
    h1 = (jnp.dot(s_ref[...], w1s_ref[...],
                  preferred_element_type=jnp.float32, precision=precision)
          + jnp.dot(a_ref[...], w1a_ref[...],
                    preferred_element_type=jnp.float32, precision=precision)
          + b1_ref[...].astype(jnp.float32))
    h1 = jnp.maximum(h1, 0.0).astype(w2_ref.dtype)

    h2 = (jnp.dot(h1, w2_ref[...],
                  preferred_element_type=jnp.float32, precision=precision)
          + b2_ref[...].astype(jnp.float32))
    h2 = jnp.maximum(h2, 0.0).astype(w3_ref.dtype)

    y = (jnp.dot(h2, w3_ref[...],
                 preferred_element_type=jnp.float32, precision=precision)
         + b3_ref[...].astype(jnp.float32))
    o_ref[...] = y.astype(o_ref.dtype)


def transition_model_forward(s, a, params, *,
                             tb=4096,
                             vmem_budget_bytes=28 << 20,
                             compute_dtype=None,
                             precision=None):
    """Pallas equivalent of TransitionModel.forward(s, a).

    Args:
      tb: requested batch-tile size (rows per grid step).  Capped by the
        lane-padding-aware VMEM budget and the batch size.
      vmem_budget_bytes: VMEM budget used to cap tb and set vmem_limit_bytes.
        Default 28 MiB is safe on every generation; raise on v5e/v6e.
      compute_dtype: optional streaming dtype for s/a/weights (e.g. bf16);
        accumulation stays f32, output stays f32.
      precision: optional lax.Precision for the dots (e.g. HIGHEST for tight
        f32 parity with the PyTorch module); None = backend default.
    """
    w1, b1, w2, b2, w3, b3 = params
    B, Ds = s.shape
    Da = a.shape[1]
    H = w1.shape[1]
    Dout = w3.shape[1]

    if compute_dtype is not None:
        s = s.astype(compute_dtype)
        a = a.astype(compute_dtype)
        w1 = w1.astype(compute_dtype)
        w2 = w2.astype(compute_dtype)
        w3 = w3.astype(compute_dtype)
    itemsize = jnp.dtype(s.dtype).itemsize

    # Split the first-layer weight instead of concatenating [s, a] in HBM.
    w1_s = w1[:Ds]
    w1_a = w1[Ds:]

    # ---- lane-padding-aware VMEM budget -> batch-tile cap -----------------
    # Per-row cost of one grid step: double-buffered s/a/out blocks plus f32
    # h1/h2 temporaries (all 128-lane padded).
    per_row_bytes = (
        2 * itemsize * (_round_up(Ds, 128) + _round_up(Da, 128))   # s, a (x2 bufs)
        + 2 * 4 * _round_up(Dout, 128)                             # out (f32, x2 bufs)
        + 2 * 4 * _round_up(H, 128)                                # h1/h2 temporaries
    )
    # Resident weights/biases (Pallas still double-buffers them; ~170 KiB here).
    weight_bytes = 2 * (
        _padded_bytes(Ds, H, itemsize) + _padded_bytes(Da, H, itemsize)
        + _padded_bytes(H, H, itemsize) + _padded_bytes(H, Dout, itemsize)
        + 2 * _padded_bytes(1, H, 4) + _padded_bytes(1, Dout, 4)
    )
    tb_cap = max(8, ((vmem_budget_bytes - weight_bytes) // max(per_row_bytes, 1)) // 8 * 8)

    tb = int(tb)
    tb = min(tb, _round_up(B, 8))      # no point tiling past the batch
    tb = min(tb, tb_cap)               # VMEM budget cap
    if B >= 1024:
        # Guarantee >= 2 grid steps so both v7x TensorCores get work
        # ("parallel" axis); one extra ~0.35 us step is noise on v5e/v6e.
        tb = min(tb, _round_up(pl.cdiv(B, 2), 8))
    tb = max(8, _round_up(tb, 8))

    grid = (pl.cdiv(B, tb),)           # boundary block clamped by Pallas; no jnp.pad

    vmem_bytes = tb * per_row_bytes + weight_bytes
    vmem_limit = int(min(96 << 20, max(32 << 20, vmem_bytes + (8 << 20))))

    # Activations / output: walk the batch axis, full feature width per block.
    def act_spec(d):
        return pl.BlockSpec((tb, d), lambda i: (i, 0))

    # Weights / biases: constant block index -> DMA'd once, VMEM-resident
    # across all batch tiles.
    def resident_spec(shape):
        return pl.BlockSpec(shape, lambda i: (0, 0))

    flops = 2 * B * (Ds * H + Da * H + H * H + H * Dout)
    bytes_accessed = (
        itemsize * B * (Ds + Da)
        + 4 * B * Dout
        + itemsize * ((Ds + Da) * H + H * H + H * Dout)
        + 4 * (2 * H + Dout)
    )

    kernel = functools.partial(transition_mlp_kernel, precision=precision)

    out = pl.pallas_call(
        kernel,
        out_shape=jax.ShapeDtypeStruct((B, Dout), jnp.float32),
        grid=grid,
        in_specs=[
            act_spec(Ds),               # s tile
            act_spec(Da),               # a tile
            resident_spec((Ds, H)),     # w1 (state half)
            resident_spec((Da, H)),     # w1 (action half)
            resident_spec((1, H)),      # b1
            resident_spec((H, H)),      # w2
            resident_spec((1, H)),      # b2
            resident_spec((H, Dout)),   # w3
            resident_spec((1, Dout)),   # b3
        ],
        out_specs=act_spec(Dout),
        compiler_params=pltpu.CompilerParams(
            dimension_semantics=("parallel",),   # megacore sharding on v7x
            vmem_limit_bytes=vmem_limit),
        cost_estimate=pl.CostEstimate(
            flops=flops, transcendentals=0, bytes_accessed=bytes_accessed),
    )(s, a, w1_s, w1_a, b1, w2, b2, w3, b3)

    return out


def init_params(key, state_dim, action_dim, hidden_size=64):
    """Deterministic synthetic init matching nn.Linear parameter shapes."""
    d_in = state_dim + action_dim
    ks = jax.random.split(key, 6)

    def lin(kw, kb, fan_in, fan_out):
        bound = 1.0 / jnp.sqrt(fan_in)
        w = jax.random.uniform(kw, (fan_in, fan_out), jnp.float32, -bound, bound)
        b = jax.random.uniform(kb, (1, fan_out), jnp.float32, -bound, bound)
        return w, b

    w1, b1 = lin(ks[0], ks[1], d_in, hidden_size)
    w2, b2 = lin(ks[2], ks[3], hidden_size, hidden_size)
    w3, b3 = lin(ks[4], ks[5], hidden_size, state_dim)
    return (w1, b1, w2, b2, w3, b3)


if __name__ == "__main__":
    state_dim, action_dim, hidden_size = 8, 4, 64
    batch = 40  # not a multiple of the small test tile -> boundary-block path

    key = jax.random.PRNGKey(0)
    k_s, k_a, k_p = jax.random.split(key, 3)
    s = jax.random.normal(k_s, (batch, state_dim), jnp.float32)
    a = jax.random.normal(k_a, (batch, action_dim), jnp.float32)
    params = init_params(k_p, state_dim, action_dim, hidden_size)

    # Reference in plain JAX (same math as the PyTorch module).
    w1, b1, w2, b2, w3, b3 = params
    x = jnp.concatenate([s, a], axis=-1)
    ref = jnp.maximum(x @ w1 + b1, 0.0)
    ref = jnp.maximum(ref @ w2 + b2, 0.0)
    ref = ref @ w3 + b3

    # Default path (tile auto-clamped to the batch -> single grid step).
    out = jax.block_until_ready(transition_model_forward(s, a, params))
    assert out.shape == (batch, state_dim)
    assert jnp.allclose(out, ref, atol=1e-4, rtol=1e-4), float(
        jnp.max(jnp.abs(out - ref)))

    # Multi-tile path with a clamped boundary block (40 rows = 16 + 16 + 8),
    # exercising the cdiv grid with no wrapper-side padding.
    out_t = jax.block_until_ready(transition_model_forward(s, a, params, tb=16))
    assert jnp.allclose(out_t, ref, atol=1e-4, rtol=1e-4), float(
        jnp.max(jnp.abs(out_t - ref)))

    # bf16 streaming path (f32 accumulation) -- the bandwidth-optimized option.
    out_bf = jax.block_until_ready(
        transition_model_forward(s, a, params, tb=16, compute_dtype=jnp.bfloat16))
    assert jnp.allclose(out_bf, ref, atol=5e-2, rtol=5e-2), float(
        jnp.max(jnp.abs(out_bf - ref)))

    print("KERNEL_OK")
</pallas_src>

<mosaic_0001>
module attributes {stable_mosaic.version = 11 : i64} {
  func.func @transition_mlp_kernel(%arg0: i32, %arg1: memref<40x8xf32, #tpu.memory_space<vmem>>, %arg2: memref<40x4xf32, #tpu.memory_space<vmem>>, %arg3: memref<8x64xf32, #tpu.memory_space<vmem>>, %arg4: memref<4x64xf32, #tpu.memory_space<vmem>>, %arg5: memref<1x64xf32, #tpu.memory_space<vmem>>, %arg6: memref<64x64xf32, #tpu.memory_space<vmem>>, %arg7: memref<1x64xf32, #tpu.memory_space<vmem>>, %arg8: memref<64x8xf32, #tpu.memory_space<vmem>>, %arg9: memref<1x8xf32, #tpu.memory_space<vmem>>, %arg10: memref<40x8xf32, #tpu.memory_space<vmem>>) attributes {dimension_semantics = [#tpu.dimension_semantics<parallel>], iteration_bounds = array<i64: 1>, scalar_prefetch = 0 : i64, scratch_operands = 0 : i64, tpu.core_type = #tpu.core_type<tc>, window_params = [{transform_indices = @transform_0, window_bounds = array<i64: 40, 8>}, {transform_indices = @transform_1, window_bounds = array<i64: 40, 4>}, {pipeline_mode = #tpu.pipeline_mode<synchronous>, transform_indices = @transform_2, window_bounds = array<i64: 8, 64>}, {pipeline_mode = #tpu.pipeline_mode<synchronous>, transform_indices = @transform_3, window_bounds = array<i64: 4, 64>}, {pipeline_mode = #tpu.pipeline_mode<synchronous>, transform_indices = @transform_4, window_bounds = array<i64: 1, 64>}, {pipeline_mode = #tpu.pipeline_mode<synchronous>, transform_indices = @transform_5, window_bounds = array<i64: 64, 64>}, {pipeline_mode = #tpu.pipeline_mode<synchronous>, transform_indices = @transform_6, window_bounds = array<i64: 1, 64>}, {pipeline_mode = #tpu.pipeline_mode<synchronous>, transform_indices = @transform_7, window_bounds = array<i64: 64, 8>}, {pipeline_mode = #tpu.pipeline_mode<synchronous>, transform_indices = @transform_8, window_bounds = array<i64: 1, 8>}, {transform_indices = @transform_9, window_bounds = array<i64: 40, 8>}]} {
    %c0 = arith.constant 0 : index
    %c0_0 = arith.constant 0 : index
    %0 = vector.load %arg1[%c0, %c0_0] : memref<40x8xf32, #tpu.memory_space<vmem>>, vector<40x8xf32>
    %c0_1 = arith.constant 0 : index
    %c0_2 = arith.constant 0 : index
    %1 = vector.load %arg3[%c0_1, %c0_2] : memref<8x64xf32, #tpu.memory_space<vmem>>, vector<8x64xf32>
    %cst = arith.constant dense<0.000000e+00> : vector<40x64xf32>
    %2 = tpu.matmul %0, %1, %cst {dimension_numbers = #tpu.dot_dimension_numbers<[1], [0], [0], [1], [0, 0, 1, 1], [], []>} : vector<40x8xf32>, vector<8x64xf32>, vector<40x64xf32> -> vector<40x64xf32>
    %c0_3 = arith.constant 0 : index
    %c0_4 = arith.constant 0 : index
    %3 = vector.load %arg2[%c0_3, %c0_4] : memref<40x4xf32, #tpu.memory_space<vmem>>, vector<40x4xf32>
    %c0_5 = arith.constant 0 : index
    %c0_6 = arith.constant 0 : index
    %4 = vector.load %arg4[%c0_5, %c0_6] : memref<4x64xf32, #tpu.memory_space<vmem>>, vector<4x64xf32>
    %cst_7 = arith.constant dense<0.000000e+00> : vector<40x64xf32>
    %5 = tpu.matmul %3, %4, %cst_7 {dimension_numbers = #tpu.dot_dimension_numbers<[1], [0], [0], [1], [0, 0, 1, 1], [], []>} : vector<40x4xf32>, vector<4x64xf32>, vector<40x64xf32> -> vector<40x64xf32>
    %6 = arith.addf %2, %5 : vector<40x64xf32>
    %c0_8 = arith.constant 0 : index
    %c0_9 = arith.constant 0 : index
    %7 = vector.load %arg5[%c0_8, %c0_9] : memref<1x64xf32, #tpu.memory_space<vmem>>, vector<1x64xf32>
    %8 = vector.broadcast %7 : vector<1x64xf32> to vector<40x64xf32>
    %9 = arith.addf %6, %8 : vector<40x64xf32>
    %cst_10 = arith.constant 0.000000e+00 : f32
    %10 = vector.broadcast %cst_10 : f32 to vector<40x64xf32>
    %11 = arith.maximumf %9, %10 : vector<40x64xf32>
    %c0_11 = arith.constant 0 : index
    %c0_12 = arith.constant 0 : index
    %12 = vector.load %arg6[%c0_11, %c0_12] : memref<64x64xf32, #tpu.memory_space<vmem>>, vector<64x64xf32>
    %cst_13 = arith.constant dense<0.000000e+00> : vector<40x64xf32>
    %13 = tpu.matmul %11, %12, %cst_13 {dimension_numbers = #tpu.dot_dimension_numbers<[1], [0], [0], [1], [0, 0, 1, 1], [], []>} : vector<40x64xf32>, vector<64x64xf32>, vector<40x64xf32> -> vector<40x64xf32>
    %c0_14 = arith.constant 0 : index
    %c0_15 = arith.constant 0 : index
    %14 = vector.load %arg7[%c0_14, %c0_15] : memref<1x64xf32, #tpu.memory_space<vmem>>, vector<1x64xf32>
    %15 = vector.broadcast %14 : vector<1x64xf32> to vector<40x64xf32>
    %16 = arith.addf %13, %15 : vector<40x64xf32>
    %cst_16 = arith.constant 0.000000e+00 : f32
    %17 = vector.broadcast %cst_16 : f32 to vector<40x64xf32>
    %18 = arith.maximumf %16, %17 : vector<40x64xf32>
    %c0_17 = arith.constant 0 : index
    %c0_18 = arith.constant 0 : index
    %19 = vector.load %arg8[%c0_17, %c0_18] : memref<64x8xf32, #tpu.memory_space<vmem>>, vector<64x8xf32>
    %cst_19 = arith.constant dense<0.000000e+00> : vector<40x8xf32>
    %20 = tpu.matmul %18, %19, %cst_19 {dimension_numbers = #tpu.dot_dimension_numbers<[1], [0], [0], [1], [0, 0, 1, 1], [], []>} : vector<40x64xf32>, vector<64x8xf32>, vector<40x8xf32> -> vector<40x8xf32>
    %c0_20 = arith.constant 0 : index
    %c0_21 = arith.constant 0 : index
    %21 = vector.load %arg9[%c0_20, %c0_21] : memref<1x8xf32, #tpu.memory_space<vmem>>, vector<1x8xf32>
    %22 = vector.broadcast %21 : vector<1x8xf32> to vector<40x8xf32>
    %23 = arith.addf %20, %22 : vector<40x8xf32>
    %c0_22 = arith.constant 0 : index
    %c0_23 = arith.constant 0 : index
    %24 = vector.load %arg10[%c0_22, %c0_23] : memref<40x8xf32, #tpu.memory_space<vmem>>, vector<40x8xf32>
    tpu.vector_store %arg10[%c0_22, %c0_23], %23 {strides = array<i32>} : memref<40x8xf32, #tpu.memory_space<vmem>>, vector<40x8xf32>,
    return
  }
  func.func @transform_0(%arg0: i32) -> (i32, i32) {
    %c0_i32 = arith.constant 0 : i32
    %c0_i32_0 = arith.constant 0 : i32
    return %arg0, %c0_i32 : i32, i32
  }
  func.func @transform_1(%arg0: i32) -> (i32, i32) {
    %c0_i32 = arith.constant 0 : i32
    %c0_i32_0 = arith.constant 0 : i32
    return %arg0, %c0_i32 : i32, i32
  }
  func.func @transform_2(%arg0: i32) -> (i32, i32) {
    %c0_i32 = arith.constant 0 : i32
    %c0_i32_0 = arith.constant 0 : i32
    %c0_i32_1 = arith.constant 0 : i32
    return %c0_i32, %c0_i32_0 : i32, i32
  }
  func.func @transform_3(%arg0: i32) -> (i32, i32) {
    %c0_i32 = arith.constant 0 : i32
    %c0_i32_0 = arith.constant 0 : i32
    %c0_i32_1 = arith.constant 0 : i32
    return %c0_i32, %c0_i32_0 : i32, i32
  }
  func.func @transform_4(%arg0: i32) -> (i32, i32) {
    %c0_i32 = arith.constant 0 : i32
    %c0_i32_0 = arith.constant 0 : i32
    %c0_i32_1 = arith.constant 0 : i32
    return %c0_i32, %c0_i32_0 : i32, i32
  }
  func.func @transform_5(%arg0: i32) -> (i32, i32) {
    %c0_i32 = arith.constant 0 : i32
    %c0_i32_0 = arith.constant 0 : i32
    %c0_i32_1 = arith.constant 0 : i32
    return %c0_i32, %c0_i32_0 : i32, i32
  }
  func.func @transform_6(%arg0: i32) -> (i32, i32) {
    %c0_i32 = arith.constant 0 : i32
    %c0_i32_0 = arith.constant 0 : i32
    %c0_i32_1 = arith.constant 0 : i32
    return %c0_i32, %c0_i32_0 : i32, i32
  }
  func.func @transform_7(%arg0: i32) -> (i32, i32) {
    %c0_i32 = arith.constant 0 : i32
    %c0_i32_0 = arith.constant 0 : i32
    %c0_i32_1 = arith.constant 0 : i32
    return %c0_i32, %c0_i32_0 : i32, i32
  }
  func.func @transform_8(%arg0: i32) -> (i32, i32) {
    %c0_i32 = arith.constant 0 : i32
    %c0_i32_0 = arith.constant 0 : i32
    %c0_i32_1 = arith.constant 0 : i32
    return %c0_i32, %c0_i32_0 : i32, i32
  }
  func.func @transform_9(%arg0: i32) -> (i32, i32) {
    %c0_i32 = arith.constant 0 : i32
    %c0_i32_0 = arith.constant 0 : i32
    return %arg0, %c0_i32 : i32, i32
  }
}

</mosaic_0001>

<llo_original>
// kernel: tpu_custom_call.1
$region0: #{tpu_custom_call.1}
  #allocation0 [shape = 'u32[]', space=smem, size = 0x4, offset = 0x4, fixed_abs, tag = 'smem constant byte address 0x4 - core index']
  #allocation1 [shape = 'u32[72,128]{1,0:T(1,128)}', space=vmem, size = 0x9000, scoped, tag = 'internal scratch']
  %s0 = inlined_call_operand.vmem [shape: f32[40,8], index: 0, kind: input, shape index: {}]
  %s1 = inlined_call_operand.vmem [shape: f32[40,4], index: 1, kind: input, shape index: {}]
  %s2 = inlined_call_operand.vmem [shape: f32[8,64], index: 2, kind: input, shape index: {}]
  %s3 = inlined_call_operand.vmem [shape: f32[4,64], index: 3, kind: input, shape index: {}]
  %s4 = inlined_call_operand.vmem [shape: f32[1,64], index: 4, kind: input, shape index: {}]
  %s5 = inlined_call_operand.vmem [shape: f32[64,64], index: 5, kind: input, shape index: {}]
  %s6 = inlined_call_operand.vmem [shape: f32[1,64], index: 6, kind: input, shape index: {}]
  %s7 = inlined_call_operand.vmem [shape: f32[64,8], index: 7, kind: input, shape index: {}]
  %s8 = inlined_call_operand.vmem [shape: f32[1,8], index: 8, kind: input, shape index: {}]
  %s9 = inlined_call_operand.vmem [shape: f32[40,8], index: 9, kind: output, shape index: {}]
  %s10 = sld [smem:[#allocation0]]
  $region46: #{tpu_custom_call.1} parent=0
    _
  %s12 = ssub.s32 1, %s10
  %s13 = scalar_select 0, %s12, %s10
  // Predicated region
  $region2: #{tpu_custom_call.1} parent=0 // pred_check
    _
  $region3: #{tpu_custom_call.1} parent=0 // pred_check_branch
    %15 = sbr.rel (0) target = $region5
  $region4: #{tpu_custom_call.1} parent=0 // pred_region
    _
  $region5: #{tpu_custom_call.1} parent=0 // pred_fallthru
    _
  // Predicated region
  $region6: #{tpu_custom_call.1} parent=0 // pred_check
    _
  $region7: #{tpu_custom_call.1} parent=0 // pred_check_branch
    %17 = sbr.rel (0) target = $region9
  $region8: #{tpu_custom_call.1} parent=0 // pred_region
    _
  $region9: #{tpu_custom_call.1} parent=0 // pred_fallthru
    _
  // Predicated region
  $region10: #{tpu_custom_call.1} parent=0 // pred_check
    _
  $region11: #{tpu_custom_call.1} parent=0 // pred_check_branch
    %19 = sbr.rel (0) target = $region13
  $region12: #{tpu_custom_call.1} parent=0 // pred_region
    _
  $region13: #{tpu_custom_call.1} parent=0 // pred_fallthru
    _
  // Predicated region
  $region14: #{tpu_custom_call.1} parent=0 // pred_check
    _
  $region15: #{tpu_custom_call.1} parent=0 // pred_check_branch
    %21 = sbr.rel (0) target = $region17
  $region16: #{tpu_custom_call.1} parent=0 // pred_region
    _
  $region17: #{tpu_custom_call.1} parent=0 // pred_fallthru
    _
  // Predicated region
  $region18: #{tpu_custom_call.1} parent=0 // pred_check
    _
  $region19: #{tpu_custom_call.1} parent=0 // pred_check_branch
    %23 = sbr.rel (0) target = $region21
  $region20: #{tpu_custom_call.1} parent=0 // pred_region
    _
  $region21: #{tpu_custom_call.1} parent=0 // pred_fallthru
    _
  // Predicated region
  $region22: #{tpu_custom_call.1} parent=0 // pred_check
    _
  $region23: #{tpu_custom_call.1} parent=0 // pred_check_branch
    %25 = sbr.rel (0) target = $region25
  $region24: #{tpu_custom_call.1} parent=0 // pred_region
    _
  $region25: #{tpu_custom_call.1} parent=0 // pred_fallthru
    _
  // Predicated region
  $region26: #{tpu_custom_call.1} parent=0 // pred_check
    _
  $region27: #{tpu_custom_call.1} parent=0 // pred_check_branch
    %27 = sbr.rel (0) target = $region29
  $region28: #{tpu_custom_call.1} parent=0 // pred_region
    _
  $region29: #{tpu_custom_call.1} parent=0 // pred_fallthru
    _
  // Predicated region
  $region30: #{tpu_custom_call.1} parent=0 // pred_check
    _
  $region31: #{tpu_custom_call.1} parent=0 // pred_check_branch
    %29 = sbr.rel (0) target = $region33
  $region32: #{tpu_custom_call.1} parent=0 // pred_region
    _
  $region33: #{tpu_custom_call.1} parent=0 // pred_fallthru
    _
  // Predicated region
  $region34: #{tpu_custom_call.1} parent=0 // pred_check
    _
  $region35: #{tpu_custom_call.1} parent=0 // pred_check_branch
    %31 = sbr.rel (0) target = $region37
  $region36: #{tpu_custom_call.1} parent=0 // pred_region
    _
  $region37: #{tpu_custom_call.1} parent=0 // pred_fallthru
    _
  %v32 = vld [vmem:[%s0] sm:$0xff]
  %v33 = vld [vmem:[%s0 + $0x8] sm:$0xff]
  %v34 = vld [vmem:[%s0 + $0x10] sm:$0xff]
  %v35 = vld [vmem:[%s0 + $0x18] sm:$0xff]
  %v36 = vld [vmem:[%s0 + $0x20] sm:$0xff]
  %v37 = vld [vmem:[%s2] sm:$0xff]
  %v38 = vld [vmem:[%s1] sm:$0xff]
  %v39 = vld [vmem:[%s1 + $0x8] sm:$0xff]
  %v40 = vld [vmem:[%s1 + $0x10] sm:$0xff]
  %v41 = vld [vmem:[%s1 + $0x18] sm:$0xff]
  %v42 = vld [vmem:[%s1 + $0x20] sm:$0xff]
  %v43 = vld [vmem:[%s3] sm:$0xf]
  %vm44 = vcmask 31744
  %v46 = vsel %vm44, %v38, 0
  %v49 = vsel %vm44, %v39, 0
  %v52 = vsel %vm44, %v40, 0
  %v55 = vsel %vm44, %v41, 0
  %v58 = vsel %vm44, %v42, 0
  %vm60 = vcmask 1043456
  %v62 = vsel %vm60, %v43, 0
  %64 = vmatpush.msra.mxu0 0.0
  %65 = vmatpush.msra.mxu0 0.0
  %66 = vmatpush.msra.mxu0 0.0
  %67 = vmatpush.msra.mxu0 0.0
  %68 = vmatpush.msra.mxu0 0.0
  %69 = vmatpush.msra.mxu0 0.0
  %70 = vmatpush.msra.mxu0 0.0
  %71 = vmatpush.msra.mxu0 0.0
  %72 = vmatpush.msra.mxu0 0.0
  %73 = vmatpush.msra.mxu0 0.0
  %74 = vmatpush.msra.mxu0 0.0
  %75 = vmatpush.msra.mxu0 0.0
  %76 = vmatpush.msra.mxu0 0.0
  %77 = vmatpush.msra.mxu0 0.0
  %78 = vmatpush.msra.mxu0 0.0
  %79 = vmatpush.msra.mxu0 %v62
  %80 = vmatmul.f32.gmra.mxu0 %v46
  %v81 = vpop.f32.mrf.mxu0
  %v82 = vadd.f32 0.0, %v81
  %83 = vmatmul.f32.gmra.mxu0 %v49
  %v84 = vpop.f32.mrf.mxu0
  %v85 = vadd.f32 0.0, %v84
  %86 = vmatmul.f32.gmra.mxu0 %v52
  %v87 = vpop.f32.mrf.mxu0
  %v88 = vadd.f32 0.0, %v87
  %89 = vmatmul.f32.gmra.mxu0 %v55
  %v90 = vpop.f32.mrf.mxu0
  %v91 = vadd.f32 0.0, %v90
  %92 = vmatmul.f32.gmra.mxu0 %v58
  %v93 = vpop.f32.mrf.mxu0
  %v94 = vadd.f32 0.0, %v93
  %95 = vdwg.mxu0
  %vm96 = vcmask 64512
  %v98 = vsel %vm96, %v32, 0
  %v101 = vsel %vm96, %v33, 0
  %v104 = vsel %vm96, %v34, 0
  %v107 = vsel %vm96, %v35, 0
  %v110 = vsel %vm96, %v36, 0
  %112 = vmatpush.msra.mxu0 0.0
  %113 = vmatpush.msra.mxu0 0.0
  %114 = vmatpush.msra.mxu0 0.0
  %115 = vmatpush.msra.mxu0 0.0
  %116 = vmatpush.msra.mxu0 0.0
  %117 = vmatpush.msra.mxu0 0.0
  %118 = vmatpush.msra.mxu0 0.0
  %119 = vmatpush.msra.mxu0 0.0
  %120 = vmatpush.msra.mxu0 0.0
  %121 = vmatpush.msra.mxu0 0.0
  %122 = vmatpush.msra.mxu0 0.0
  %123 = vmatpush.msra.mxu0 0.0
  %124 = vmatpush.msra.mxu0 0.0
  %125 = vmatpush.msra.mxu0 0.0
  %126 = vmatpush.msra.mxu0 0.0
  %127 = vmatpush.msra.mxu0 %v37
  %128 = vmatmul.f32.gmra.mxu0 %v98
  %v129 = vpop.f32.mrf.mxu0
  %v130 = vadd.f32 %v82, %v129
  %131 = vmatmul.f32.gmra.mxu0 %v101
  %v132 = vpop.f32.mrf.mxu0
  %v133 = vadd.f32 %v85, %v132
  %134 = vmatmul.f32.gmra.mxu0 %v104
  %v135 = vpop.f32.mrf.mxu0
  %v136 = vadd.f32 %v88, %v135
  %137 = vmatmul.f32.gmra.mxu0 %v107
  %v138 = vpop.f32.mrf.mxu0
  %v139 = vadd.f32 %v91, %v138
  %140 = vmatmul.f32.gmra.mxu0 %v110
  %v141 = vpop.f32.mrf.mxu0
  %v142 = vadd.f32 %v94, %v141
  %143 = vdwg.mxu0
  %v144 = vld [vmem:[%s4] sm:$0x1]
  %v146 = vperm.slane %v144, 0
  %v148 = vadd.f32 %v130, %v146
  %v149 = vadd.f32 %v133, %v146
  %v150 = vadd.f32 %v136, %v146
  %v151 = vadd.f32 %v139, %v146
  %v152 = vadd.f32 %v142, %v146
  %v153 = vmax.f32 %v148, 0.0
  %v154 = vmax.f32 %v149, 0.0
  %v155 = vmax.f32 %v150, 0.0
  %v156 = vmax.f32 %v151, 0.0
  %v157 = vmax.f32 %v152, 0.0
  %v158 = vld [vmem:[%s5] sm:$0xff]
  %v159 = vld [vmem:[%s5 + $0x8] sm:$0xff]
  %v160 = vld [vmem:[%s5 + $0x10] sm:$0xff]
  %v161 = vld [vmem:[%s5 + $0x18] sm:$0xff]
  %v162 = vld [vmem:[%s5 + $0x20] sm:$0xff]
  %v163 = vld [vmem:[%s5 + $0x28] sm:$0xff]
  %v164 = vld [vmem:[%s5 + $0x30] sm:$0xff]
  %v165 = vld [vmem:[%s5 + $0x38] sm:$0xff]
  %v166 = vld [vmem:[%s6] sm:$0x1]
  %v168 = vperm.slane %v166, 0
  %vm170 = vcmask 523264
  %v172 = vsel %vm170, %v153, 0
  %v175 = vsel %vm170, %v154, 0
  %v178 = vsel %vm170, %v155, 0
  %v181 = vsel %vm170, %v156, 0
  %v184 = vsel %vm170, %v157, 0
  %186 = vmatpush.msra.mxu0 0.0
  %187 = vmatpush.msra.mxu0 0.0
  %188 = vmatpush.msra.mxu0 0.0
  %189 = vmatpush.msra.mxu0 0.0
  %190 = vmatpush.msra.mxu0 0.0
  %191 = vmatpush.msra.mxu0 0.0
  %192 = vmatpush.msra.mxu0 0.0
  %193 = vmatpush.msra.mxu0 0.0
  %194 = vmatpush.msra.mxu0 %v165
  %195 = vmatpush.msra.mxu0 %v164
  %196 = vmatpush.msra.mxu0 %v163
  %197 = vmatpush.msra.mxu0 %v162
  %198 = vmatpush.msra.mxu0 %v161
  %199 = vmatpush.msra.mxu0 %v160
  %200 = vmatpush.msra.mxu0 %v159
  %201 = vmatpush.msra.mxu0 %v158
  %202 = vmatmul.f32.gmra.mxu0 %v172
  %v203 = vpop.f32.mrf.mxu0
  %v204 = vadd.f32 %v168, %v203
  %205 = vmatmul.f32.gmra.mxu0 %v175
  %v206 = vpop.f32.mrf.mxu0
  %v207 = vadd.f32 %v168, %v206
  %208 = vmatmul.f32.gmra.mxu0 %v178
  %v209 = vpop.f32.mrf.mxu0
  %v210 = vadd.f32 %v168, %v209
  %211 = vmatmul.f32.gmra.mxu0 %v181
  %v212 = vpop.f32.mrf.mxu0
  %v213 = vadd.f32 %v168, %v212
  %214 = vmatmul.f32.gmra.mxu0 %v184
  %v215 = vpop.f32.mrf.mxu0
  %v216 = vadd.f32 %v168, %v215
  %217 = vdwg.mxu0
  %v218 = vmax.f32 %v204, 0.0
  %v219 = vmax.f32 %v207, 0.0
  %v220 = vmax.f32 %v210, 0.0
  %v221 = vmax.f32 %v213, 0.0
  %v222 = vmax.f32 %v216, 0.0
  %v223 = vld [vmem:[%s7] sm:$0xff]
  %v224 = vld [vmem:[%s7 + $0x8] sm:$0xff]
  %v225 = vld [vmem:[%s7 + $0x10] sm:$0xff]
  %v226 = vld [vmem:[%s7 + $0x18] sm:$0xff]
  %v227 = vld [vmem:[%s7 + $0x20] sm:$0xff]
  %v228 = vld [vmem:[%s7 + $0x28] sm:$0xff]
  %v229 = vld [vmem:[%s7 + $0x30] sm:$0xff]
  %v230 = vld [vmem:[%s7 + $0x38] sm:$0xff]
  %v231 = vld [vmem:[%s8] sm:$0x1]
  %v233 = vperm.slane %v231, 0
  %v236 = vsel %vm170, %v218, 0
  %v239 = vsel %vm170, %v219, 0
  %v242 = vsel %vm170, %v220, 0
  %v245 = vsel %vm170, %v221, 0
  %v248 = vsel %vm170, %v222, 0
  %250 = vmatpush.msra.mxu0 0.0
  %251 = vmatpush.msra.mxu0 0.0
  %252 = vmatpush.msra.mxu0 0.0
  %253 = vmatpush.msra.mxu0 0.0
  %254 = vmatpush.msra.mxu0 0.0
  %255 = vmatpush.msra.mxu0 0.0
  %256 = vmatpush.msra.mxu0 0.0
  %257 = vmatpush.msra.mxu0 0.0
  %258 = vmatpush.msra.mxu0 %v230
  %259 = vmatpush.msra.mxu0 %v229
  %260 = vmatpush.msra.mxu0 %v228
  %261 = vmatpush.msra.mxu0 %v227
  %262 = vmatpush.msra.mxu0 %v226
  %263 = vmatpush.msra.mxu0 %v225
  %264 = vmatpush.msra.mxu0 %v224
  %265 = vmatpush.msra.mxu0 %v223
  %266 = vmatmul.f32.gmra.mxu0 %v236
  %v267 = vpop.f32.mrf.mxu0
  %v268 = vadd.f32 %v233, %v267
  %269 = vmatmul.f32.gmra.mxu0 %v239
  %v270 = vpop.f32.mrf.mxu0
  %v271 = vadd.f32 %v233, %v270
  %272 = vmatmul.f32.gmra.mxu0 %v242
  %v273 = vpop.f32.mrf.mxu0
  %v274 = vadd.f32 %v233, %v273
  %275 = vmatmul.f32.gmra.mxu0 %v245
  %v276 = vpop.f32.mrf.mxu0
  %v277 = vadd.f32 %v233, %v276
  %278 = vmatmul.f32.gmra.mxu0 %v248
  %v279 = vpop.f32.mrf.mxu0
  %v280 = vadd.f32 %v233, %v279
  %281 = vdwg.mxu0
  %282 = vst.msk [vmem:[%s9] sm:$0xff] %vm96, %v268
  %283 = vst.msk [vmem:[%s9 + $0x8] sm:$0xff] %vm96, %v271
  %284 = vst.msk [vmem:[%s9 + $0x10] sm:$0xff] %vm96, %v274
  %285 = vst.msk [vmem:[%s9 + $0x18] sm:$0xff] %vm96, %v277
  %286 = vst.msk [vmem:[%s9 + $0x20] sm:$0xff] %vm96, %v280
  // Predicated region
  $region38: #{tpu_custom_call.1} parent=0 // pred_check
    _
  $region39: #{tpu_custom_call.1} parent=0 // pred_check_branch
    %288 = sbr.rel (0) target = $region41
  $region40: #{tpu_custom_call.1} parent=0 // pred_region
    _
  $region41: #{tpu_custom_call.1} parent=0 // pred_fallthru
    _
  // Predicated region
  $region42: #{tpu_custom_call.1} parent=0 // pred_check
    _
  $region43: #{tpu_custom_call.1} parent=0 // pred_check_branch
    %290 = sbr.rel (0) target = $region45
  $region44: #{tpu_custom_call.1} parent=0 // pred_region
    _
  $region45: #{tpu_custom_call.1} parent=0 // pred_fallthru
    _

</llo_original>
